<compile_context>
chip_gen: v5e
topology: v5e:2x2
jax: 0.10.0
libtpu: 0.0.40
codegen_flags: <defaults>
</compile_context>

<pallas_src>
import math
import numpy as np
import jax
import jax.numpy as jnp
from jax.experimental import pallas as pl
from jax.experimental.pallas import tpu as pltpu


# --------------------------------------------------------------------------
# helpers
# --------------------------------------------------------------------------
def _sublane_align(dtype):
    """Minimum sublane tile for a dtype (8 f32, 16 bf16, 32 int8/fp8)."""
    return max(8, 32 // jnp.dtype(dtype).itemsize)


def _pick_tile(dim, target, align):
    """Largest `align`-aligned divisor of `dim` that is <= target, else full dim."""
    if dim <= target:
        return dim
    t = (target // align) * align
    while t >= align:
        if dim % t == 0:
            return t
        t -= align
    return dim  # full-extent block (exempt from (8,128) divisibility)


# --------------------------------------------------------------------------
# Tiled linear: y = x @ W^T, W stored (out_features, in_features) like nn.Linear
# --------------------------------------------------------------------------
def _linear_kernel(x_ref, w_ref, o_ref, acc_ref):
    @pl.when(pl.program_id(2) == 0)
    def _():
        acc_ref[...] = jnp.zeros_like(acc_ref)

    # Contract x's K axis (dim 1) against w's K axis (dim 1): x @ W^T on the
    # MXU without ever materializing W.T in HBM.
    acc_ref[...] += jax.lax.dot_general(
        x_ref[...], w_ref[...],
        dimension_numbers=(((1,), (1,)), ((), ())),
        preferred_element_type=jnp.float32,
    )

    @pl.when(pl.program_id(2) == pl.num_programs(2) - 1)
    def _():
        o_ref[...] = acc_ref[...].astype(o_ref.dtype)


def pallas_linear(x, w, *, tm=512, tn=512, tk=1024):
    """x: (M, K), w: (N, K) as stored by nn.Linear -> (M, N) in x.dtype."""
    M, K = x.shape
    N, K2 = w.shape
    assert K == K2
    tm = _pick_tile(M, tm, _sublane_align(x.dtype))
    tn = _pick_tile(N, tn, 128)     # tn is a lane dim of the output block
    tk = _pick_tile(K, tk, 128)
    grid = (M // tm, N // tn, K // tk)

    itemsize = jnp.dtype(x.dtype).itemsize
    cost = pl.CostEstimate(
        flops=int(2 * M * N * K),
        transcendentals=0,
        # account for grid re-reads of x (N/tn times) and w (M/tm times)
        bytes_accessed=int(itemsize * (M * K * (N // tn) + N * K * (M // tm) + M * N)),
    )
    return pl.pallas_call(
        _linear_kernel,
        out_shape=jax.ShapeDtypeStruct((M, N), x.dtype),
        grid_spec=pltpu.PrefetchScalarGridSpec(
            num_scalar_prefetch=0,
            grid=grid,
            in_specs=[
                pl.BlockSpec((tm, tk), lambda i, j, k: (i, k)),
                pl.BlockSpec((tn, tk), lambda i, j, k: (j, k)),
            ],
            out_specs=pl.BlockSpec((tm, tn), lambda i, j, k: (i, j)),
            scratch_shapes=[pltpu.VMEM((tm, tn), jnp.float32)],
        ),
        compiler_params=pltpu.CompilerParams(
            dimension_semantics=("parallel", "parallel", "arbitrary"),
            vmem_limit_bytes=32 * 1024 * 1024,   # fits v7x's 64 MiB with headroom
        ),
        cost_estimate=cost,
    )(x, w)


# --------------------------------------------------------------------------
# RoPE kernel: applied once per element on (B, H, T, D) tensors.
# rotate_half's minus sign and any extra scale are folded into cos/sin tables.
# --------------------------------------------------------------------------
def _make_rope_kernel(rotary_dim, head_dim):
    half = rotary_dim // 2
    rd = rotary_dim
    D = head_dim

    def kernel(x_ref, cos_ref, sin_ref, o_ref):
        x = x_ref[0, 0].astype(jnp.float32)      # (tt, D)
        cos = cos_ref[...]                       # (tt, D): [cos | cos | 1] (*scale)
        sin = sin_ref[...]                       # (tt, D): [-sin | sin | 0] (*scale)
        x1 = x[:, :half]
        x2 = x[:, half:rd]
        if rd < D:
            swapped = jnp.concatenate([x2, x1, x[:, rd:]], axis=-1)
        else:
            swapped = jnp.concatenate([x2, x1], axis=-1)
        o_ref[0, 0] = (x * cos + swapped * sin).astype(o_ref.dtype)

    return kernel


def pallas_rope(x, cos, sin, rotary_dim):
    """x: (B, H, T, D), cos/sin: (T, D) (sign/scale pre-folded) -> same shape."""
    B, H, T, D = x.shape
    tt = _pick_tile(T, 256, _sublane_align(x.dtype))
    kernel = _make_rope_kernel(rotary_dim, D)
    return pl.pallas_call(
        kernel,
        out_shape=jax.ShapeDtypeStruct(x.shape, x.dtype),
        grid=(B, H, T // tt),
        in_specs=[
            pl.BlockSpec((1, 1, tt, D), lambda b, h, t: (b, h, t, 0)),
            pl.BlockSpec((tt, D), lambda b, h, t: (t, 0)),
            pl.BlockSpec((tt, D), lambda b, h, t: (t, 0)),
        ],
        out_specs=pl.BlockSpec((1, 1, tt, D), lambda b, h, t: (b, h, t, 0)),
        compiler_params=pltpu.CompilerParams(
            dimension_semantics=("parallel", "parallel", "parallel"),
            vmem_limit_bytes=32 * 1024 * 1024,
        ),
    )(x, cos, sin)


# --------------------------------------------------------------------------
# Flash-style causal attention with online softmax.
# grid = (B, Hq, T//tq, T//tk); GQA handled in the K/V index_map (h // groups).
# q is expected pre-RoPE'd and pre-scaled by 1/sqrt(D); k pre-RoPE'd.
# --------------------------------------------------------------------------
def _make_flash_kernel(tq, tk):
    neg = float(jnp.finfo(jnp.float32).min)

    def kernel(q_ref, k_ref, v_ref, o_ref, m_ref, l_ref, acc_ref):
        qi = pl.program_id(2)
        ki = pl.program_id(3)
        nkv = pl.num_programs(3)

        @pl.when(ki == 0)
        def _():
            m_ref[...] = jnp.full_like(m_ref, -jnp.inf)
            l_ref[...] = jnp.zeros_like(l_ref)
            acc_ref[...] = jnp.zeros_like(acc_ref)

        q_start = qi * tq
        k_start = ki * tk

        # Skip KV blocks that lie entirely above the causal diagonal.
        @pl.when(k_start <= q_start + (tq - 1))
        def _():
            q = q_ref[0, 0]                       # (tq, D), input dtype (bf16-ready)
            k = k_ref[0, 0]                       # (tk, D)
            s = jax.lax.dot_general(              # (tq, tk) f32 scores on MXU
                q, k, (((1,), (1,)), ((), ())),
                preferred_element_type=jnp.float32)
            # per-block causal mask from small block-local iotas
            row = q_start + jax.lax.broadcasted_iota(jnp.int32, (tq, tk), 0)
            col = k_start + jax.lax.broadcasted_iota(jnp.int32, (tq, tk), 1)
            s = jnp.where(col <= row, s, neg)

            m_prev = m_ref[...]                   # (tq, 1)
            m_new = jnp.maximum(m_prev, jnp.max(s, axis=-1, keepdims=True))
            alpha = jnp.exp(m_prev - m_new)
            p = jnp.exp(s - m_new)                # (tq, tk) f32
            l_ref[...] = alpha * l_ref[...] + jnp.sum(p, axis=-1, keepdims=True)
            acc_ref[...] = alpha * acc_ref[...] + jnp.dot(
                p.astype(v_ref.dtype), v_ref[0, 0],
                preferred_element_type=jnp.float32)
            m_ref[...] = m_new

        @pl.when(ki == nkv - 1)
        def _():
            # exact reciprocal: runs once per q-block on (tq,1) values (free)
            o_ref[0, 0] = (acc_ref[...] *
                           pl.reciprocal(l_ref[...], approx=False)
                           ).astype(o_ref.dtype)

    return kernel


def pallas_flash_attention(q, k, v, *, tq=128, tk=128):
    """q: (B,Hq,T,D) (RoPE'd & pre-scaled), k/v: (B,Hkv,T,D) -> (B,Hq,T,D)."""
    B, Hq, T, D = q.shape
    Hkv = k.shape[1]
    groups = Hq // Hkv
    align = _sublane_align(q.dtype)
    tq = _pick_tile(T, tq, align)
    tk = _pick_tile(T, tk, align)
    grid = (B, Hq, T // tq, T // tk)

    kv_map = lambda b, h, qi, ki: (b, h // groups, ki, 0)   # GQA via index_map
    itemsize = jnp.dtype(q.dtype).itemsize
    cost = pl.CostEstimate(
        flops=int(2 * B * Hq * T * T * D),            # ~half skipped by causality
        transcendentals=int(B * Hq * T * T // 2),
        bytes_accessed=int(itemsize * (
            B * Hq * T * D                            # q (resident per q-block)
            + 2 * B * Hq * (T // tq) * T * D          # k, v re-read per q-block
            + B * Hq * T * D)),                       # output
    )
    return pl.pallas_call(
        _make_flash_kernel(tq, tk),
        out_shape=jax.ShapeDtypeStruct((B, Hq, T, D), q.dtype),
        grid=grid,
        in_specs=[
            pl.BlockSpec((1, 1, tq, D), lambda b, h, qi, ki: (b, h, qi, 0)),
            pl.BlockSpec((1, 1, tk, D), kv_map),
            pl.BlockSpec((1, 1, tk, D), kv_map),
        ],
        out_specs=pl.BlockSpec((1, 1, tq, D), lambda b, h, qi, ki: (b, h, qi, 0)),
        scratch_shapes=[
            pltpu.VMEM((tq, 1), jnp.float32),   # running max m
            pltpu.VMEM((tq, 1), jnp.float32),   # running sum l
            pltpu.VMEM((tq, D), jnp.float32),   # output accumulator
        ],
        compiler_params=pltpu.CompilerParams(
            dimension_semantics=("parallel", "parallel", "parallel", "arbitrary"),
            vmem_limit_bytes=32 * 1024 * 1024,
        ),
        cost_estimate=cost,
    )(q, k, v)


# --------------------------------------------------------------------------
# Full forward: StableLMAttention (eval, no cache, causal mask, pos = arange)
# --------------------------------------------------------------------------
def stablelm_attention_forward(hidden, w_q, w_k, w_v, w_o, num_heads,
                               num_kv_heads, rotary_ndims, rope_theta=10000.0):
    B, T, E = hidden.shape
    Hq, Hkv = num_heads, num_kv_heads
    D = E // Hq
    assert Hq % Hkv == 0
    rd = rotary_ndims

    # Fused Q/K/V projection: one matmul so `hidden` is streamed from HBM once.
    w_qkv = jnp.concatenate([w_q, w_k, w_v], axis=0)        # ((Hq+2Hkv)*D, E)
    x2d = hidden.reshape(B * T, E)
    qkv = pallas_linear(x2d, w_qkv)                         # (B*T, (Hq+2Hkv)*D)
    q2d = qkv[:, :Hq * D]
    k2d = qkv[:, Hq * D:(Hq + Hkv) * D]
    v2d = qkv[:, (Hq + Hkv) * D:]

    # Layout plumbing: one transpose so kernel blocks end in a full-extent D.
    q = q2d.reshape(B, T, Hq, D).transpose(0, 2, 1, 3)       # (B, Hq, T, D)
    k = k2d.reshape(B, T, Hkv, D).transpose(0, 2, 1, 3)      # (B, Hkv, T, D)
    v = v2d.reshape(B, T, Hkv, D).transpose(0, 2, 1, 3)

    # RotaryEmbedding tables (position_ids = arange(T)), padded to head_dim:
    #   cos = [cos | cos | 1], sin (rotate_half sign folded) = [-sin | sin | 0].
    inv_freq = 1.0 / (rope_theta ** (jnp.arange(0, rd, 2, dtype=jnp.float32) / rd))
    t = jnp.arange(T, dtype=jnp.float32)
    freqs = t[:, None] * inv_freq[None, :]                   # (T, rd/2)
    cos_r, sin_r = jnp.cos(freqs), jnp.sin(freqs)
    cos_full = jnp.concatenate(
        [cos_r, cos_r, jnp.ones((T, D - rd), jnp.float32)], axis=-1)
    sin_full = jnp.concatenate(
        [-sin_r, sin_r, jnp.zeros((T, D - rd), jnp.float32)], axis=-1)

    # RoPE once per element; 1/sqrt(D) softmax scale folded into Q's tables.
    scale = 1.0 / math.sqrt(float(D))
    q = pallas_rope(q, cos_full * scale, sin_full * scale, rd)
    k = pallas_rope(k, cos_full, sin_full, rd)

    attn = pallas_flash_attention(q, k, v)                   # (B, Hq, T, D)
    attn = attn.transpose(0, 2, 1, 3).reshape(B * T, E)      # lane-dense (…, E)

    out = pallas_linear(attn, w_o).reshape(B, T, E)
    return out


# --------------------------------------------------------------------------
# Pure-JAX reference mirroring the PyTorch module (for correctness check)
# --------------------------------------------------------------------------
def ref_forward(hidden, w_q, w_k, w_v, w_o, num_heads, num_kv_heads,
                rotary_ndims, rope_theta=10000.0):
    B, T, E = hidden.shape
    D = E // num_heads
    groups = num_heads // num_kv_heads
    rd = rotary_ndims

    q = (hidden @ w_q.T).reshape(B, T, num_heads, D).transpose(0, 2, 1, 3)
    k = (hidden @ w_k.T).reshape(B, T, num_kv_heads, D).transpose(0, 2, 1, 3)
    v = (hidden @ w_v.T).reshape(B, T, num_kv_heads, D).transpose(0, 2, 1, 3)

    q_rot, q_pass = q[..., :rd], q[..., rd:]
    k_rot, k_pass = k[..., :rd], k[..., rd:]

    inv_freq = 1.0 / (rope_theta ** (jnp.arange(0, rd, 2, dtype=jnp.float32) / rd))
    t = jnp.arange(T, dtype=jnp.float32)
    freqs = t[:, None] * inv_freq[None, :]
    emb = jnp.concatenate([freqs, freqs], axis=-1)
    cos = jnp.cos(emb)[None, None]
    sin = jnp.sin(emb)[None, None]

    def rotate_half(x):
        x1, x2 = jnp.split(x, 2, axis=-1)
        return jnp.concatenate([-x2, x1], axis=-1)

    q_rot = q_rot * cos + rotate_half(q_rot) * sin
    k_rot = k_rot * cos + rotate_half(k_rot) * sin
    q = jnp.concatenate([q_rot, q_pass], axis=-1)
    k = jnp.concatenate([k_rot, k_pass], axis=-1)

    k = jnp.repeat(k, groups, axis=1)
    v = jnp.repeat(v, groups, axis=1)

    scores = jnp.einsum("bhqd,bhkd->bhqk", q, k) / jnp.sqrt(jnp.float32(D))
    mask = jnp.tril(jnp.ones((T, T), bool))
    scores = jnp.where(mask, scores, jnp.finfo(jnp.float32).min)
    probs = jax.nn.softmax(scores, axis=-1)
    out = jnp.einsum("bhqk,bhkd->bhqd", probs, v)
    out = out.transpose(0, 2, 1, 3).reshape(B, T, E)
    return out @ w_o.T


# --------------------------------------------------------------------------
if __name__ == "__main__":
    # Small StableLM-like config: hidden=128, heads=4 (head_dim=32),
    # kv_heads=2 (GQA groups=2), rope_pct=0.25 -> rotary_ndims=8, seq=16, batch=2.
    B, T, E = 2, 16, 128
    H, HKV = 4, 2
    D = E // H
    rotary_ndims = int(D * 0.25)   # 8

    key0 = jax.random.PRNGKey(0)
    k1, k2, k3, k4, k5 = jax.random.split(key0, 5)
    hidden = jax.random.normal(k1, (B, T, E), dtype=jnp.float32)
    w_q = jax.random.normal(k2, (H * D, E), dtype=jnp.float32) * 0.02
    w_k = jax.random.normal(k3, (HKV * D, E), dtype=jnp.float32) * 0.02
    w_v = jax.random.normal(k4, (HKV * D, E), dtype=jnp.float32) * 0.02
    w_o = jax.random.normal(k5, (E, E), dtype=jnp.float32) * 0.02

    out = stablelm_attention_forward(hidden, w_q, w_k, w_v, w_o,
                                     H, HKV, rotary_ndims)
    out = jax.block_until_ready(out)

    ref = ref_forward(hidden, w_q, w_k, w_v, w_o, H, HKV, rotary_ndims)
    np.testing.assert_allclose(np.asarray(out), np.asarray(ref),
                               rtol=2e-3, atol=2e-3)

    print("KERNEL_OK")
</pallas_src>

<mosaic_0001>
module attributes {stable_mosaic.version = 11 : i64} {
  func.func @_linear_kernel(%arg0: i32, %arg1: i32, %arg2: i32, %arg3: memref<32x128xf32, #tpu.memory_space<vmem>>, %arg4: memref<256x128xf32, #tpu.memory_space<vmem>>, %arg5: memref<32x256xf32, #tpu.memory_space<vmem>>, %arg6: memref<32x256xf32, #tpu.memory_space<vmem>>) attributes {dimension_semantics = [#tpu.dimension_semantics<parallel>, #tpu.dimension_semantics<parallel>, #tpu.dimension_semantics<arbitrary>], iteration_bounds = array<i64: 1, 1, 1>, scalar_prefetch = 0 : i64, scratch_operands = 1 : i64, tpu.core_type = #tpu.core_type<tc>, window_params = [{transform_indices = @transform_0, window_bounds = array<i64: 32, 128>}, {transform_indices = @transform_1, window_bounds = array<i64: 256, 128>}, {transform_indices = @transform_2, window_bounds = array<i64: 32, 256>}]} {
    %c0_i32 = arith.constant 0 : i32
    %0 = arith.cmpi eq, %arg2, %c0_i32 : i32
    %1 = arith.extui %0 : i1 to i32
    %c0_i32_0 = arith.constant 0 : i32
    %2 = arith.cmpi ne, %1, %c0_i32_0 : i32
    scf.if %2 {
      %cst_10 = arith.constant 0.000000e+00 : f32
      %12 = vector.broadcast %cst_10 : f32 to vector<32x256xf32>
      %c0_11 = arith.constant 0 : index
      %c0_12 = arith.constant 0 : index
      %13 = vector.load %arg6[%c0_11, %c0_12] : memref<32x256xf32, #tpu.memory_space<vmem>>, vector<32x256xf32>
      tpu.vector_store %arg6[%c0_11, %c0_12], %12 {strides = array<i32>} : memref<32x256xf32, #tpu.memory_space<vmem>>, vector<32x256xf32>,
    } else {
    }
    %c0 = arith.constant 0 : index
    %c0_1 = arith.constant 0 : index
    %3 = vector.load %arg6[%c0, %c0_1] : memref<32x256xf32, #tpu.memory_space<vmem>>, vector<32x256xf32>
    %c0_2 = arith.constant 0 : index
    %c0_3 = arith.constant 0 : index
    %4 = vector.load %arg3[%c0_2, %c0_3] : memref<32x128xf32, #tpu.memory_space<vmem>>, vector<32x128xf32>
    %c0_4 = arith.constant 0 : index
    %c0_5 = arith.constant 0 : index
    %5 = vector.load %arg4[%c0_4, %c0_5] : memref<256x128xf32, #tpu.memory_space<vmem>>, vector<256x128xf32>
    %cst = arith.constant dense<0.000000e+00> : vector<32x256xf32>
    %6 = tpu.matmul %4, %5, %cst {dimension_numbers = #tpu.dot_dimension_numbers<[1], [1], [0], [0], [0, 0, 1, 0], [], []>} : vector<32x128xf32>, vector<256x128xf32>, vector<32x256xf32> -> vector<32x256xf32>
    %7 = arith.addf %3, %6 : vector<32x256xf32>
    %c0_6 = arith.constant 0 : index
    %c0_7 = arith.constant 0 : index
    %8 = vector.load %arg6[%c0_6, %c0_7] : memref<32x256xf32, #tpu.memory_space<vmem>>, vector<32x256xf32>
    tpu.vector_store %arg6[%c0_6, %c0_7], %7 {strides = array<i32>} : memref<32x256xf32, #tpu.memory_space<vmem>>, vector<32x256xf32>,
    %c0_i32_8 = arith.constant 0 : i32
    %9 = arith.cmpi eq, %arg2, %c0_i32_8 : i32
    %10 = arith.extui %9 : i1 to i32
    %c0_i32_9 = arith.constant 0 : i32
    %11 = arith.cmpi ne, %10, %c0_i32_9 : i32
    scf.if %11 {
      %c0_10 = arith.constant 0 : index
      %c0_11 = arith.constant 0 : index
      %12 = vector.load %arg6[%c0_10, %c0_11] : memref<32x256xf32, #tpu.memory_space<vmem>>, vector<32x256xf32>
      %c0_12 = arith.constant 0 : index
      %c0_13 = arith.constant 0 : index
      %13 = vector.load %arg5[%c0_12, %c0_13] : memref<32x256xf32, #tpu.memory_space<vmem>>, vector<32x256xf32>
      tpu.vector_store %arg5[%c0_12, %c0_13], %12 {strides = array<i32>} : memref<32x256xf32, #tpu.memory_space<vmem>>, vector<32x256xf32>,
    } else {
    }
    return
  }
  func.func @transform_0(%arg0: i32, %arg1: i32, %arg2: i32) -> (i32, i32) {
    %c0_i32 = arith.constant 0 : i32
    return %arg0, %arg2 : i32, i32
  }
  func.func @transform_1(%arg0: i32, %arg1: i32, %arg2: i32) -> (i32, i32) {
    %c0_i32 = arith.constant 0 : i32
    return %arg1, %arg2 : i32, i32
  }
  func.func @transform_2(%arg0: i32, %arg1: i32, %arg2: i32) -> (i32, i32) {
    %c0_i32 = arith.constant 0 : i32
    return %arg0, %arg1 : i32, i32
  }
}

</mosaic_0001>

<llo_original>
// kernel: tpu_custom_call.1
$region0: #{tpu_custom_call.1}
  #allocation0 [shape = 'u32[]', space=smem, size = 0x4, offset = 0x4, fixed_abs, tag = 'smem constant byte address 0x4 - core index']
  #allocation1 [shape = 'u32[72,128]{1,0:T(1,128)}', space=vmem, size = 0x9000, scoped, tag = 'internal scratch']
  #allocation2 [shape = 'f32[32,256]{1,0:T(8,128)}', space=vmem, size = 0x8000, scoped, tag = 'scratch operand']
  %s0 = inlined_call_operand.hbm [shape: f32[32,128], index: 0, kind: input, shape index: {}]
  %s1 = inlined_call_operand.hbm [shape: f32[256,128], index: 1, kind: input, shape index: {}]
  %s2 = inlined_call_operand.hbm [shape: f32[32,256], index: 2, kind: output, shape index: {}]
  %s3 = sld [smem:[#allocation0]]
  $region34: #{tpu_custom_call.1} parent=0
    _
  %s5 = ssub.s32 1, %s3
  %s6 = scalar_select 0, %s5, %s3
  $region1: #{tpu_custom_call.1} parent=0
    #allocation3 [shape = 'u8[16384]{0}', space=vmem, size = 0x4000, scoped, tag = 'input window, operand 0, single buffered']
    #allocation4 [shape = 's32[1]{0}', space=sflag, size = 0x4, scoped, tag = 'scoped memory for tpu_custom_call.1']
    #allocation5 [shape = 's32[1]{0}', space=sflag, size = 0x4, scoped, tag = 'scoped memory for tpu_custom_call.1']
    #allocation6 [shape = 'u8[131072]{0}', space=vmem, size = 0x20000, scoped, tag = 'input window, operand 1, single buffered']
    #allocation7 [shape = 's32[1]{0}', space=sflag, size = 0x4, scoped, tag = 'scoped memory for tpu_custom_call.1']
    #allocation8 [shape = 'u8[32768]{0}', space=vmem, size = 0x8000, scoped, tag = 'output window, operand 0, single buffered']
    %7 = vsyncpa [#allocation4], 0
    %8 = vsyncpa [#allocation7], 0
    %9 = vsyncpa [#allocation5], 0
    // Predicated region
    $region2: #{tpu_custom_call.1} parent=1 // pred_check
      _
    $region3: #{tpu_custom_call.1} parent=1 // pred_check_branch
      %11 = sbr.rel (0) target = $region5
    $region4: #{tpu_custom_call.1} parent=1 // pred_region
      %13 = vsyncadd [#allocation4], 0
      %s14 = sshll.u32 %s0, 4
      %s15 = int_to_ptr.hbm [resolvable:$true] %s14
      %s16 = sshll.u32 [#allocation3], 4
      %s17 = int_to_ptr.vmem [resolvable:$true] %s16
      %22 = dma.hbm_to_vmem [thread:$0]  %s15, 512, %s17, [#allocation4], 128, 128, 8
    $region5: #{tpu_custom_call.1} parent=1 // pred_fallthru
      _
    // Predicated region
    $region6: #{tpu_custom_call.1} parent=1 // pred_check
      _
    $region7: #{tpu_custom_call.1} parent=1 // pred_check_branch
      %24 = sbr.rel (0) target = $region9
    $region8: #{tpu_custom_call.1} parent=1 // pred_region
      %26 = vsyncadd [#allocation7], 0
      %s27 = sshll.u32 %s1, 4
      %s28 = int_to_ptr.hbm [resolvable:$true] %s27
      %s29 = sshll.u32 [#allocation6], 4
      %s30 = int_to_ptr.vmem [resolvable:$true] %s29
      %35 = dma.hbm_to_vmem [thread:$0]  %s28, 4096, %s30, [#allocation7], 128, 128, 8
    $region9: #{tpu_custom_call.1} parent=1 // pred_fallthru
      _
    // Predicated region
    $region10: #{tpu_custom_call.1} parent=1 // pred_check
      _
    $region11: #{tpu_custom_call.1} parent=1 // pred_check_branch
      %37 = sbr.rel (0) target = $region13
    $region12: #{tpu_custom_call.1} parent=1 // pred_region
      %39 = dma.done [#allocation4], 512
    $region13: #{tpu_custom_call.1} parent=1 // pred_fallthru
      _
    // Predicated region
    $region14: #{tpu_custom_call.1} parent=1 // pred_check
      _
    $region15: #{tpu_custom_call.1} parent=1 // pred_check_branch
      %41 = sbr.rel (0) target = $region17
    $region16: #{tpu_custom_call.1} parent=1 // pred_region
      %43 = dma.done [#allocation7], 4096
    $region17: #{tpu_custom_call.1} parent=1 // pred_fallthru
      _
    %p44 = scmp.eq.s32.totalorder 0, 0
    // Predicated region
    $region18: #{tpu_custom_call.1} parent=1 // pred_check
      %p45 = pneg %p44
    $region19: #{tpu_custom_call.1} parent=1 // pred_check_branch
      %47 = sbr.rel (%p45) target = $region21
    $region20: #{tpu_custom_call.1} parent=1 // pred_region
      %48 = vst [vmem:[#allocation2] sm:$0xff] 0.0
      %49 = vst [vmem:[#allocation2 + $0x8] sm:$0xff] 0.0
      %50 = vst [vmem:[#allocation2 + $0x10] sm:$0xff] 0.0
      %51 = vst [vmem:[#allocation2 + $0x18] sm:$0xff] 0.0
      %52 = vst [vmem:[#allocation2 + $0x20] sm:$0xff] 0.0
      %53 = vst [vmem:[#allocation2 + $0x28] sm:$0xff] 0.0
      %54 = vst [vmem:[#allocation2 + $0x30] sm:$0xff] 0.0
      %55 = vst [vmem:[#allocation2 + $0x38] sm:$0xff] 0.0
    $region21: #{tpu_custom_call.1} parent=1 // pred_fallthru
      _
    %v56 = vld [vmem:[#allocation2] sm:$0xff]
    %v57 = vld [vmem:[#allocation2 + $0x8] sm:$0xff]
    %v58 = vld [vmem:[#allocation2 + $0x10] sm:$0xff]
    %v59 = vld [vmem:[#allocation2 + $0x18] sm:$0xff]
    %v60 = vld [vmem:[#allocation2 + $0x20] sm:$0xff]
    %v61 = vld [vmem:[#allocation2 + $0x28] sm:$0xff]
    %v62 = vld [vmem:[#allocation2 + $0x30] sm:$0xff]
    %v63 = vld [vmem:[#allocation2 + $0x38] sm:$0xff]
    %v64 = vld [vmem:[#allocation3] sm:$0xff]
    %v65 = vld [vmem:[#allocation3 + $0x8] sm:$0xff]
    %v66 = vld [vmem:[#allocation3 + $0x10] sm:$0xff]
    %v67 = vld [vmem:[#allocation3 + $0x18] sm:$0xff]
    %v68 = vld [vmem:[#allocation6] sm:$0xff]
    %v69 = vld [vmem:[#allocation6 + $0x8] sm:$0xff]
    %v70 = vld [vmem:[#allocation6 + $0x10] sm:$0xff]
    %v71 = vld [vmem:[#allocation6 + $0x18] sm:$0xff]
    %v72 = vld [vmem:[#allocation6 + $0x20] sm:$0xff]
    %v73 = vld [vmem:[#allocation6 + $0x28] sm:$0xff]
    %v74 = vld [vmem:[#allocation6 + $0x30] sm:$0xff]
    %v75 = vld [vmem:[#allocation6 + $0x38] sm:$0xff]
    %v76 = vld [vmem:[#allocation6 + $0x40] sm:$0xff]
    %v77 = vld [vmem:[#allocation6 + $0x48] sm:$0xff]
    %v78 = vld [vmem:[#allocation6 + $0x50] sm:$0xff]
    %v79 = vld [vmem:[#allocation6 + $0x58] sm:$0xff]
    %v80 = vld [vmem:[#allocation6 + $0x60] sm:$0xff]
    %v81 = vld [vmem:[#allocation6 + $0x68] sm:$0xff]
    %v82 = vld [vmem:[#allocation6 + $0x70] sm:$0xff]
    %v83 = vld [vmem:[#allocation6 + $0x78] sm:$0xff]
    %v84 = vld [vmem:[#allocation6 + $0x80] sm:$0xff]
    %v85 = vld [vmem:[#allocation6 + $0x88] sm:$0xff]
    %v86 = vld [vmem:[#allocation6 + $0x90] sm:$0xff]
    %v87 = vld [vmem:[#allocation6 + $0x98] sm:$0xff]
    %v88 = vld [vmem:[#allocation6 + $0xa0] sm:$0xff]
    %v89 = vld [vmem:[#allocation6 + $0xa8] sm:$0xff]
    %v90 = vld [vmem:[#allocation6 + $0xb0] sm:$0xff]
    %v91 = vld [vmem:[#allocation6 + $0xb8] sm:$0xff]
    %v92 = vld [vmem:[#allocation6 + $0xc0] sm:$0xff]
    %v93 = vld [vmem:[#allocation6 + $0xc8] sm:$0xff]
    %v94 = vld [vmem:[#allocation6 + $0xd0] sm:$0xff]
    %v95 = vld [vmem:[#allocation6 + $0xd8] sm:$0xff]
    %v96 = vld [vmem:[#allocation6 + $0xe0] sm:$0xff]
    %v97 = vld [vmem:[#allocation6 + $0xe8] sm:$0xff]
    %v98 = vld [vmem:[#allocation6 + $0xf0] sm:$0xff]
    %v99 = vld [vmem:[#allocation6 + $0xf8] sm:$0xff]
    %100 = vmatpush.xpose.msra.mxu0 %v83
    %101 = vmatpush.xpose.msra.mxu0 %v82
    %102 = vmatpush.xpose.msra.mxu0 %v81
    %103 = vmatpush.xpose.msra.mxu0 %v80
    %104 = vmatpush.xpose.msra.mxu0 %v79
    %105 = vmatpush.xpose.msra.mxu0 %v78
    %106 = vmatpush.xpose.msra.mxu0 %v77
    %107 = vmatpush.xpose.msra.mxu0 %v76
    %108 = vmatpush.xpose.msra.mxu0 %v75
    %109 = vmatpush.xpose.msra.mxu0 %v74
    %110 = vmatpush.xpose.msra.mxu0 %v73
    %111 = vmatpush.xpose.msra.mxu0 %v72
    %112 = vmatpush.xpose.msra.mxu0 %v71
    %113 = vmatpush.xpose.msra.mxu0 %v70
    %114 = vmatpush.xpose.msra.mxu0 %v69
    %115 = vmatpush.xpose.msra.mxu0 %v68
    %116 = vmatmul.f32.gmra.mxu0 %v64
    %v117 = vpop.f32.mrf.mxu0
    %v118 = vadd.f32 0.0, %v117
    %119 = vmatmul.f32.gmra.mxu0 %v65
    %v120 = vpop.f32.mrf.mxu0
    %v121 = vadd.f32 0.0, %v120
    %122 = vmatmul.f32.gmra.mxu0 %v66
    %v123 = vpop.f32.mrf.mxu0
    %v124 = vadd.f32 0.0, %v123
    %125 = vmatmul.f32.gmra.mxu0 %v67
    %v126 = vpop.f32.mrf.mxu0
    %v127 = vadd.f32 0.0, %v126
    %128 = vdwg.mxu0
    %129 = vmatpush.xpose.msra.mxu0 %v99
    %130 = vmatpush.xpose.msra.mxu0 %v98
    %131 = vmatpush.xpose.msra.mxu0 %v97
    %132 = vmatpush.xpose.msra.mxu0 %v96
    %133 = vmatpush.xpose.msra.mxu0 %v95
    %134 = vmatpush.xpose.msra.mxu0 %v94
    %135 = vmatpush.xpose.msra.mxu0 %v93
    %136 = vmatpush.xpose.msra.mxu0 %v92
    %137 = vmatpush.xpose.msra.mxu0 %v91
    %138 = vmatpush.xpose.msra.mxu0 %v90
    %139 = vmatpush.xpose.msra.mxu0 %v89
    %140 = vmatpush.xpose.msra.mxu0 %v88
    %141 = vmatpush.xpose.msra.mxu0 %v87
    %142 = vmatpush.xpose.msra.mxu0 %v86
    %143 = vmatpush.xpose.msra.mxu0 %v85
    %144 = vmatpush.xpose.msra.mxu0 %v84
    %145 = vmatmul.f32.gmra.mxu0 %v64
    %v146 = vpop.f32.mrf.mxu0
    %v147 = vadd.f32 0.0, %v146
    %148 = vmatmul.f32.gmra.mxu0 %v65
    %v149 = vpop.f32.mrf.mxu0
    %v150 = vadd.f32 0.0, %v149
    %151 = vmatmul.f32.gmra.mxu0 %v66
    %v152 = vpop.f32.mrf.mxu0
    %v153 = vadd.f32 0.0, %v152
    %154 = vmatmul.f32.gmra.mxu0 %v67
    %v155 = vpop.f32.mrf.mxu0
    %v156 = vadd.f32 0.0, %v155
    %157 = vdwg.mxu0
    %v158 = vadd.f32 %v56, %v118
    %v159 = vadd.f32 %v57, %v147
    %v160 = vadd.f32 %v58, %v121
    %v161 = vadd.f32 %v59, %v150
    %v162 = vadd.f32 %v60, %v124
    %v163 = vadd.f32 %v61, %v153
    %v164 = vadd.f32 %v62, %v127
    %v165 = vadd.f32 %v63, %v156
    %166 = vst [vmem:[#allocation2] sm:$0xff] %v158
    %167 = vst [vmem:[#allocation2 + $0x8] sm:$0xff] %v159
    %168 = vst [vmem:[#allocation2 + $0x10] sm:$0xff] %v160
    %169 = vst [vmem:[#allocation2 + $0x18] sm:$0xff] %v161
    %170 = vst [vmem:[#allocation2 + $0x20] sm:$0xff] %v162
    %171 = vst [vmem:[#allocation2 + $0x28] sm:$0xff] %v163
    %172 = vst [vmem:[#allocation2 + $0x30] sm:$0xff] %v164
    %173 = vst [vmem:[#allocation2 + $0x38] sm:$0xff] %v165
    // Predicated region
    $region22: #{tpu_custom_call.1} parent=1 // pred_check
      %p174 = pneg %p44
    $region23: #{tpu_custom_call.1} parent=1 // pred_check_branch
      %176 = sbr.rel (%p174) target = $region25
    $region24: #{tpu_custom_call.1} parent=1 // pred_region
      %v177 = vld [vmem:[#allocation2] sm:$0xff]
      %v178 = vld [vmem:[#allocation2 + $0x8] sm:$0xff]
      %v179 = vld [vmem:[#allocation2 + $0x10] sm:$0xff]
      %v180 = vld [vmem:[#allocation2 + $0x18] sm:$0xff]
      %v181 = vld [vmem:[#allocation2 + $0x20] sm:$0xff]
      %v182 = vld [vmem:[#allocation2 + $0x28] sm:$0xff]
      %v183 = vld [vmem:[#allocation2 + $0x30] sm:$0xff]
      %v184 = vld [vmem:[#allocation2 + $0x38] sm:$0xff]
      %185 = vst [vmem:[#allocation8] sm:$0xff] %v177
      %186 = vst [vmem:[#allocation8 + $0x8] sm:$0xff] %v178
      %187 = vst [vmem:[#allocation8 + $0x10] sm:$0xff] %v179
      %188 = vst [vmem:[#allocation8 + $0x18] sm:$0xff] %v180
      %189 = vst [vmem:[#allocation8 + $0x20] sm:$0xff] %v181
      %190 = vst [vmem:[#allocation8 + $0x28] sm:$0xff] %v182
      %191 = vst [vmem:[#allocation8 + $0x30] sm:$0xff] %v183
      %192 = vst [vmem:[#allocation8 + $0x38] sm:$0xff] %v184
    $region25: #{tpu_custom_call.1} parent=1 // pred_fallthru
      _
    // Predicated region
    $region26: #{tpu_custom_call.1} parent=1 // pred_check
      _
    $region27: #{tpu_custom_call.1} parent=1 // pred_check_branch
      %194 = sbr.rel (0) target = $region29
    $region28: #{tpu_custom_call.1} parent=1 // pred_region
      %196 = vsyncadd [#allocation5], 0
      %s197 = sshll.u32 [#allocation8], 4
      %s198 = int_to_ptr.vmem [resolvable:$true] %s197
      %s199 = sshll.u32 %s2, 4
      %s200 = int_to_ptr.hbm [resolvable:$true] %s199
      %205 = dma.vmem_to_hbm [thread:$0]  %s198, 1024, %s200, [#allocation5], 256, 256, 16
    $region29: #{tpu_custom_call.1} parent=1 // pred_fallthru
      _
    // Predicated region
    $region30: #{tpu_custom_call.1} parent=1 // pred_check
      _
    $region31: #{tpu_custom_call.1} parent=1 // pred_check_branch
      %207 = sbr.rel (0) target = $region33
    $region32: #{tpu_custom_call.1} parent=1 // pred_region
      %209 = dma.done [#allocation5], 1024
    $region33: #{tpu_custom_call.1} parent=1 // pred_fallthru
      _
    %210 = vsyncpa [#allocation4], 1
    %211 = vsyncpa [#allocation7], 1
    %212 = vsyncpa [#allocation5], 1

</llo_original>
